<compile_context>
chip_gen: v7x
topology: tpu7x:2x2x1
jax: 0.10.0
libtpu: 0.0.40
codegen_flags: <defaults>
</compile_context>

<pallas_src>
import math
import jax
import jax.numpy as jnp
from jax.experimental import pallas as pl
from jax.experimental.pallas import tpu as pltpu

# Small, forward-consistent hyper-parameters (original: L=2500, Co=100, C=64).
V = 50          # dict_len (vocabulary rows in the word2vec table)
D = 32          # embed_size (word2vec width)
L = 16          # sequence length (== BatchNorm1d num_features; 2500 in original)
N = 2           # batch
CO = 16         # kernel_num
KS = (3, 4, 5)  # kernel_sizes
KMAX = max(KS)
NF = len(KS) * CO   # pooled-feature width = lane width of the fused conv output
C = 16          # emb_dim -> fc1 output features
BN_EPS = 1e-5
OUT_PAD = 128   # lane-dense output / FC-weight padding width

# Tiling.  TILE_L must be a multiple of 8; use ~512 at L=2500 and re-derive the
# tile sizes per generation against vmem_limit_bytes (v7x: 64 MiB VMEM vs 128
# on v5e/v6e).  TILE_N should be a multiple of 8 at production batch sizes so
# the (TILE_N, 128) output store is an unmasked full-sublane vst.
TILE_L = 8
HALO = 8                      # rows of the next L tile fetched (>= KMAX - 1)
TILE_N = N if N <= 8 else 8


def wordcnn_kernel(x_ref, xh_ref, wim_ref, fcw_ref, tab_ref, out_ref, mx_ref):
    """Fused im2col-conv -> running global max-pool -> relu -> FC.

    Grid: (N / TILE_N, L_pad / TILE_L), dims ("parallel", "arbitrary").

    x_ref   : (TILE_N, TILE_L, D)  bf16  BN-folded embeddings, current L tile
    xh_ref  : (TILE_N, HALO, D)    bf16  first HALO rows of the next L tile
    wim_ref : (KMAX*D, NF)         bf16  im2col conv weight (zero-padded taps)
    fcw_ref : (NF, OUT_PAD)        bf16  FC weight, output lanes zero-padded
    tab_ref : (3, OUT_PAD)         f32   row0 conv bias, row1 FC bias, row2 mask thresh
    out_ref : (TILE_N, OUT_PAD)    f32   written only on the last L step
    mx_ref  : (TILE_N, NF)         f32   running max over L tiles
    """
    l = pl.program_id(1)
    tn, tl, _ = x_ref.shape

    @pl.when(l == 0)
    def _init():
        mx_ref[...] = jnp.full_like(mx_ref, -jnp.inf)

    # im2col on the bf16 input: window[t] = [x[t], x[t+1], ..., x[t+KMAX-1]].
    # The halo rows make windows that cross the L-tile boundary exact.
    xcat = jnp.concatenate([x_ref[...], xh_ref[...]], axis=1)   # (tn, tl+HALO, D)
    xwin = jnp.concatenate([xcat[:, k:k + tl, :] for k in range(KMAX)],
                           axis=-1)                             # (tn, tl, KMAX*D)

    # One MXU matmul covers every width and every tap (contraction depth 160).
    s = jnp.dot(xwin.reshape(tn * tl, KMAX * D), wim_ref[...],
                preferred_element_type=jnp.float32)             # (tn*tl, NF) f32
    s = s.reshape(tn, tl, NF)

    # Mask window starts t > L - K: one compare of the per-tile position iota
    # against the per-lane threshold row (lanes of width K use L - K).
    t_pos = (l * tl + jax.lax.broadcasted_iota(jnp.int32, (1, tl, NF), 1)
             ).astype(jnp.float32)
    thresh = tab_ref[2:3, :NF].reshape(1, 1, NF)
    s = jnp.where(t_pos <= thresh, s, -jnp.inf)

    # Running global max-pool over the L grid axis (cheap sublane reduce).
    mx_ref[...] = jnp.maximum(mx_ref[...], jnp.max(s, axis=1))

    @pl.when(l == pl.num_programs(1) - 1)
    def _finalize():
        # max_t(relu(conv_t + b)) == relu(max_t(conv_t) + b): b is t-invariant,
        # relu is monotone.
        # TODO(synk): nn.Dropout implemented as eval-mode identity (no RNG mask).
        feats = jnp.maximum(mx_ref[...] + tab_ref[0:1, :NF], 0.0)      # (tn, NF)
        out = jnp.dot(feats.astype(fcw_ref.dtype), fcw_ref[...],
                      preferred_element_type=jnp.float32)              # (tn, 128)
        out_ref[...] = out + tab_ref[1:2, :]                           # dense store


def init_params(key):
    ks = jax.random.split(key, 16)
    params = {}
    # word2vec table: torch.load(...) followed by tanh -> synthetic tanh(normal)
    params["emb_table"] = jnp.tanh(jax.random.normal(ks[0], (V, D), jnp.float32))
    # BatchNorm1d(L) eval-mode parameters / running stats
    params["bn_gamma"] = jax.random.uniform(ks[1], (L,), jnp.float32, 0.5, 1.5)
    params["bn_beta"] = 0.1 * jax.random.normal(ks[2], (L,), jnp.float32)
    params["bn_mean"] = 0.1 * jax.random.normal(ks[3], (L,), jnp.float32)
    params["bn_var"] = jax.random.uniform(ks[4], (L,), jnp.float32, 0.5, 1.5)
    # Conv2d(1, Co, (K, D)) weights, stored as (K, D, Co)
    for i, K in enumerate(KS):
        bound = 1.0 / math.sqrt(K * D)
        params[f"w{K}"] = jax.random.uniform(ks[5 + i], (K, D, CO),
                                             jnp.float32, -bound, bound)
        params[f"b{K}"] = jax.random.uniform(ks[8 + i], (1, CO),
                                             jnp.float32, -bound, bound)
    # fc1: Linear(len(Ks)*Co, C), weight stored transposed as (3*Co, C)
    bound = 1.0 / math.sqrt(len(KS) * CO)
    params["fcw"] = jax.random.uniform(ks[11], (len(KS) * CO, C),
                                       jnp.float32, -bound, bound)
    params["fcb"] = jax.random.uniform(ks[12], (1, C), jnp.float32, -bound, bound)
    return params


def pack_params(params):
    """One-time packing of the many tiny parameter tensors into 3 kernel inputs."""
    packed = {"emb_table": params["emb_table"]}
    # BN running stats folded into a per-position affine (applied in the wrapper,
    # where XLA fuses it into the embedding gather for free).
    scale = params["bn_gamma"] * jax.lax.rsqrt(params["bn_var"] + BN_EPS)   # (L,)
    packed["bn_scale"] = scale
    packed["bn_shift"] = params["bn_beta"] - params["bn_mean"] * scale      # (L,)
    # im2col conv weight: rows [k*D, (k+1)*D) of lane group i hold tap k of
    # width KS[i]; taps k >= KS[i] are zero, so ONE matmul does every width.
    w_im = jnp.zeros((KMAX * D, NF), jnp.float32)
    for i, K in enumerate(KS):
        w_im = w_im.at[:K * D, i * CO:(i + 1) * CO].set(
            params[f"w{K}"].reshape(K * D, CO))
    packed["w_im2col"] = w_im.astype(jnp.bfloat16)
    # FC weight, output lanes zero-padded to 128 (lane-dense kernel output).
    packed["fcw"] = jnp.pad(params["fcw"],
                            ((0, 0), (0, OUT_PAD - C))).astype(jnp.bfloat16)
    # f32 table: row0 conv biases, row1 FC bias, row2 valid-window thresholds.
    conv_b = jnp.concatenate([params[f"b{K}"] for K in KS], axis=1)         # (1, NF)
    thresh = jnp.concatenate(
        [jnp.full((1, CO), float(L - K), jnp.float32) for K in KS], axis=1)
    rows = [jnp.pad(conv_b, ((0, 0), (0, OUT_PAD - NF))),
            jnp.pad(params["fcb"], ((0, 0), (0, OUT_PAD - C))),
            jnp.pad(thresh, ((0, 0), (0, OUT_PAD - NF)), constant_values=-1.0)]
    packed["table"] = jnp.concatenate(rows, axis=0).astype(jnp.float32)
    return packed


@jax.jit
def wordcnn_forward(ids, packed):
    # Glue (fused by XLA): embedding gather + folded BN affine + bf16 cast.
    emb = jnp.take(packed["emb_table"], ids, axis=0)                      # (N, L, D)
    x = emb * packed["bn_scale"][None, :, None] + packed["bn_shift"][None, :, None]
    x = x.astype(jnp.bfloat16)

    l_pad = pl.cdiv(L, TILE_L) * TILE_L
    if l_pad != L:      # pad to whole L tiles; padded positions are masked in-kernel
        x = jnp.pad(x, ((0, 0), (0, l_pad - L), (0, 0)))
    n_l = l_pad // TILE_L
    halo_blocks = l_pad // HALO
    grid = (N // TILE_N, n_l)

    out = pl.pallas_call(
        wordcnn_kernel,
        out_shape=jax.ShapeDtypeStruct((N, OUT_PAD), jnp.float32),
        grid_spec=pltpu.PrefetchScalarGridSpec(
            num_scalar_prefetch=0,
            grid=grid,
            in_specs=[
                # current L tile
                pl.BlockSpec((TILE_N, TILE_L, D), lambda n, l: (n, l, 0)),
                # halo: first HALO rows of the next L tile (clamped on last tile;
                # the clamped rows only feed masked positions)
                pl.BlockSpec((TILE_N, HALO, D),
                             lambda n, l: (n, jnp.minimum(
                                 (l + 1) * (TILE_L // HALO), halo_blocks - 1), 0)),
                # parameters: constant index_maps -> VMEM-resident across steps
                pl.BlockSpec((KMAX * D, NF), lambda n, l: (0, 0)),
                pl.BlockSpec((NF, OUT_PAD), lambda n, l: (0, 0)),
                pl.BlockSpec((3, OUT_PAD), lambda n, l: (0, 0)),
            ],
            out_specs=pl.BlockSpec((TILE_N, OUT_PAD), lambda n, l: (n, 0)),
            scratch_shapes=[pltpu.VMEM((TILE_N, NF), jnp.float32)],
        ),
        compiler_params=pltpu.CompilerParams(
            # batch axis shards across v7x's 2 TensorCores; L axis is the
            # running-max reduction (kept last).
            dimension_semantics=("parallel", "arbitrary"),
            # Safe on all generations; re-derive TILE_N/TILE_L against this per
            # chip (v7x: 64 MiB physical VMEM vs 128 MiB on v5e/v6e).
            vmem_limit_bytes=32 * 1024 * 1024,
        ),
    )(x, x, packed["w_im2col"], packed["fcw"], packed["table"])
    return out[:, :C]


def reference_forward(ids, params):
    # Pure-JAX f32 reference of the same (eval-mode) forward for a sanity check.
    hp = jax.lax.Precision.HIGHEST
    emb = jnp.take(params["emb_table"], ids, axis=0).astype(jnp.float32)
    scale = params["bn_gamma"] * jax.lax.rsqrt(params["bn_var"] + BN_EPS)
    shift = params["bn_beta"] - params["bn_mean"] * scale
    x = emb * scale[None, :, None] + shift[None, :, None]
    feats = []
    for K in KS:
        w, b = params[f"w{K}"], params[f"b{K}"]
        conv = jnp.stack(
            [jnp.einsum("nkd,kdc->nc", x[:, t:t + K, :], w, precision=hp)
             for t in range(L - K + 1)], axis=1) + b[:, None, :]
        feats.append(jnp.max(jax.nn.relu(conv), axis=1))
    feats = jnp.concatenate(feats, axis=1)
    return jnp.dot(feats, params["fcw"], precision=hp) + params["fcb"]


if __name__ == "__main__":
    key = jax.random.PRNGKey(0)
    pkey, ikey = jax.random.split(key)
    params = init_params(pkey)
    packed = pack_params(params)
    ids = jax.random.randint(ikey, (N, L), 0, V, dtype=jnp.int32)   # token ids

    out = wordcnn_forward(ids, packed)
    out = jax.block_until_ready(out)
    assert out.shape == (N, C), out.shape

    ref = reference_forward(ids, params)
    # bf16 MXU operands with f32 accumulation vs f32-HIGHEST reference.
    assert jnp.allclose(out, ref, atol=1e-2, rtol=1e-2), (out, ref)
    print("KERNEL_OK")
</pallas_src>

<mosaic_0001>
module attributes {stable_mosaic.version = 11 : i64} {
  func.func @wordcnn_kernel(%arg0: i32, %arg1: i32, %arg2: memref<2x8x32xbf16, #tpu.memory_space<vmem>>, %arg3: memref<2x8x32xbf16, #tpu.memory_space<vmem>>, %arg4: memref<160x48xbf16, #tpu.memory_space<vmem>>, %arg5: memref<48x128xbf16, #tpu.memory_space<vmem>>, %arg6: memref<3x128xf32, #tpu.memory_space<vmem>>, %arg7: memref<2x128xf32, #tpu.memory_space<vmem>>, %arg8: memref<2x48xf32, #tpu.memory_space<vmem>>) attributes {dimension_semantics = [#tpu.dimension_semantics<parallel>, #tpu.dimension_semantics<arbitrary>], iteration_bounds = array<i64: 1, 2>, scalar_prefetch = 0 : i64, scratch_operands = 1 : i64, tpu.core_type = #tpu.core_type<tc>, window_params = [{transform_indices = @transform_0, window_bounds = array<i64: 2, 8, 32>}, {transform_indices = @transform_1, window_bounds = array<i64: 2, 8, 32>}, {pipeline_mode = #tpu.pipeline_mode<synchronous>, transform_indices = @transform_2, window_bounds = array<i64: 160, 48>}, {pipeline_mode = #tpu.pipeline_mode<synchronous>, transform_indices = @transform_3, window_bounds = array<i64: 48, 128>}, {pipeline_mode = #tpu.pipeline_mode<synchronous>, transform_indices = @transform_4, window_bounds = array<i64: 3, 128>}, {transform_indices = @transform_5, window_bounds = array<i64: 2, 128>}]} {
    %c0_i32 = arith.constant 0 : i32
    %0 = arith.cmpi eq, %arg1, %c0_i32 : i32
    %1 = arith.extui %0 : i1 to i32
    %c0_i32_0 = arith.constant 0 : i32
    %2 = arith.cmpi ne, %1, %c0_i32_0 : i32
    scf.if %2 {
      %cst_16 = arith.constant 0xFF800000 : f32
      %36 = vector.broadcast %cst_16 : f32 to vector<2x48xf32>
      %c0_17 = arith.constant 0 : index
      %c0_18 = arith.constant 0 : index
      %37 = vector.load %arg8[%c0_17, %c0_18] : memref<2x48xf32, #tpu.memory_space<vmem>>, vector<2x48xf32>
      tpu.vector_store %arg8[%c0_17, %c0_18], %36 {strides = array<i32>} : memref<2x48xf32, #tpu.memory_space<vmem>>, vector<2x48xf32>,
    } else {
    }
    %c0 = arith.constant 0 : index
    %c0_1 = arith.constant 0 : index
    %c0_2 = arith.constant 0 : index
    %3 = vector.load %arg2[%c0, %c0_1, %c0_2] : memref<2x8x32xbf16, #tpu.memory_space<vmem>>, vector<2x8x32xbf16>
    %c0_3 = arith.constant 0 : index
    %c0_4 = arith.constant 0 : index
    %c0_5 = arith.constant 0 : index
    %4 = vector.load %arg3[%c0_3, %c0_4, %c0_5] : memref<2x8x32xbf16, #tpu.memory_space<vmem>>, vector<2x8x32xbf16>
    %5 = tpu.concatenate %3, %4 in 1 : vector<2x8x32xbf16>, vector<2x8x32xbf16> -> vector<2x16x32xbf16>
    %6 = vector.extract_strided_slice %5 {offsets = [0, 0, 0], sizes = [2, 8, 32], strides = [1, 1, 1]} : vector<2x16x32xbf16> to vector<2x8x32xbf16>
    %7 = vector.extract_strided_slice %5 {offsets = [0, 1, 0], sizes = [2, 8, 32], strides = [1, 1, 1]} : vector<2x16x32xbf16> to vector<2x8x32xbf16>
    %8 = vector.extract_strided_slice %5 {offsets = [0, 2, 0], sizes = [2, 8, 32], strides = [1, 1, 1]} : vector<2x16x32xbf16> to vector<2x8x32xbf16>
    %9 = vector.extract_strided_slice %5 {offsets = [0, 3, 0], sizes = [2, 8, 32], strides = [1, 1, 1]} : vector<2x16x32xbf16> to vector<2x8x32xbf16>
    %10 = vector.extract_strided_slice %5 {offsets = [0, 4, 0], sizes = [2, 8, 32], strides = [1, 1, 1]} : vector<2x16x32xbf16> to vector<2x8x32xbf16>
    %11 = tpu.concatenate %6, %7, %8, %9, %10 in 2 : vector<2x8x32xbf16>, vector<2x8x32xbf16>, vector<2x8x32xbf16>, vector<2x8x32xbf16>, vector<2x8x32xbf16> -> vector<2x8x160xbf16>
    %12 = vector.shape_cast %11 : vector<2x8x160xbf16> to vector<16x160xbf16>
    %c0_6 = arith.constant 0 : index
    %c0_7 = arith.constant 0 : index
    %13 = vector.load %arg4[%c0_6, %c0_7] : memref<160x48xbf16, #tpu.memory_space<vmem>>, vector<160x48xbf16>
    %cst = arith.constant dense<0.000000e+00> : vector<16x48xf32>
    %14 = tpu.matmul %12, %13, %cst {dimension_numbers = #tpu.dot_dimension_numbers<[1], [0], [0], [1], [0, 0, 1, 1], [], []>} : vector<16x160xbf16>, vector<160x48xbf16>, vector<16x48xf32> -> vector<16x48xf32>
    %15 = vector.shape_cast %14 : vector<16x48xf32> to vector<2x8x48xf32>
    %c8_i32 = arith.constant 8 : i32
    %16 = arith.muli %arg1, %c8_i32 : i32
    %17 = tpu.iota {dimensions = array<i32: 1>} : vector<1x8x48xi32>
    %18 = vector.broadcast %16 : i32 to vector<1x8x48xi32>
    %19 = arith.addi %18, %17 : vector<1x8x48xi32>
    %20 = arith.sitofp %19 : vector<1x8x48xi32> to vector<1x8x48xf32>
    %c2 = arith.constant 2 : index
    %c0_8 = arith.constant 0 : index
    %21 = vector.load %arg6[%c2, %c0_8] : memref<3x128xf32, #tpu.memory_space<vmem>>, vector<1x48xf32>
    %22 = vector.shape_cast %21 : vector<1x48xf32> to vector<1x1x48xf32>
    %23 = vector.broadcast %22 : vector<1x1x48xf32> to vector<1x8x48xf32>
    %24 = arith.cmpf ole, %20, %23 : vector<1x8x48xf32>
    %cst_9 = arith.constant 0xFF800000 : f32
    %25 = vector.shape_cast %24 : vector<1x8x48xi1> to vector<1x8x48xi1>
    %26 = vector.broadcast %25 : vector<1x8x48xi1> to vector<2x8x48xi1>
    %27 = vector.broadcast %cst_9 : f32 to vector<2x8x48xf32>
    %28 = arith.select %26, %15, %27 : vector<2x8x48xi1>, vector<2x8x48xf32>
    %c0_10 = arith.constant 0 : index
    %c0_11 = arith.constant 0 : index
    %29 = vector.load %arg8[%c0_10, %c0_11] : memref<2x48xf32, #tpu.memory_space<vmem>>, vector<2x48xf32>
    %cst_12 = arith.constant dense<0xFF800000> : vector<2x48xf32>
    %30 = vector.multi_reduction <maximumf>, %28, %cst_12 [1] : vector<2x8x48xf32> to vector<2x48xf32>
    %31 = arith.maximumf %29, %30 : vector<2x48xf32>
    %c0_13 = arith.constant 0 : index
    %c0_14 = arith.constant 0 : index
    %32 = vector.load %arg8[%c0_13, %c0_14] : memref<2x48xf32, #tpu.memory_space<vmem>>, vector<2x48xf32>
    tpu.vector_store %arg8[%c0_13, %c0_14], %31 {strides = array<i32>} : memref<2x48xf32, #tpu.memory_space<vmem>>, vector<2x48xf32>,
    %c1_i32 = arith.constant 1 : i32
    %33 = arith.cmpi eq, %arg1, %c1_i32 : i32
    %34 = arith.extui %33 : i1 to i32
    %c0_i32_15 = arith.constant 0 : i32
    %35 = arith.cmpi ne, %34, %c0_i32_15 : i32
    scf.if %35 {
      %c0_16 = arith.constant 0 : index
      %c0_17 = arith.constant 0 : index
      %36 = vector.load %arg8[%c0_16, %c0_17] : memref<2x48xf32, #tpu.memory_space<vmem>>, vector<2x48xf32>
      %c0_18 = arith.constant 0 : index
      %c0_19 = arith.constant 0 : index
      %37 = vector.load %arg6[%c0_18, %c0_19] : memref<3x128xf32, #tpu.memory_space<vmem>>, vector<1x48xf32>
      %38 = vector.broadcast %37 : vector<1x48xf32> to vector<2x48xf32>
      %39 = arith.addf %36, %38 : vector<2x48xf32>
      %cst_20 = arith.constant 0.000000e+00 : f32
      %40 = vector.broadcast %cst_20 : f32 to vector<2x48xf32>
      %41 = arith.maximumf %39, %40 : vector<2x48xf32>
      %42 = arith.truncf %41 : vector<2x48xf32> to vector<2x48xbf16>
      %c0_21 = arith.constant 0 : index
      %c0_22 = arith.constant 0 : index
      %43 = vector.load %arg5[%c0_21, %c0_22] : memref<48x128xbf16, #tpu.memory_space<vmem>>, vector<48x128xbf16>
      %cst_23 = arith.constant dense<0.000000e+00> : vector<2x128xf32>
      %44 = tpu.matmul %42, %43, %cst_23 {dimension_numbers = #tpu.dot_dimension_numbers<[1], [0], [0], [1], [0, 0, 1, 1], [], []>} : vector<2x48xbf16>, vector<48x128xbf16>, vector<2x128xf32> -> vector<2x128xf32>
      %c1 = arith.constant 1 : index
      %c0_24 = arith.constant 0 : index
      %45 = vector.load %arg6[%c1, %c0_24] : memref<3x128xf32, #tpu.memory_space<vmem>>, vector<1x128xf32>
      %46 = vector.broadcast %45 : vector<1x128xf32> to vector<2x128xf32>
      %47 = arith.addf %44, %46 : vector<2x128xf32>
      %c0_25 = arith.constant 0 : index
      %c0_26 = arith.constant 0 : index
      %48 = vector.load %arg7[%c0_25, %c0_26] : memref<2x128xf32, #tpu.memory_space<vmem>>, vector<2x128xf32>
      tpu.vector_store %arg7[%c0_25, %c0_26], %47 {strides = array<i32>} : memref<2x128xf32, #tpu.memory_space<vmem>>, vector<2x128xf32>,
    } else {
    }
    return
  }
  func.func @transform_0(%arg0: i32, %arg1: i32) -> (i32, i32, i32) {
    %c0_i32 = arith.constant 0 : i32
    %c0_i32_0 = arith.constant 0 : i32
    return %arg0, %arg1, %c0_i32 : i32, i32, i32
  }
  func.func @transform_1(%arg0: i32, %arg1: i32) -> (i32, i32, i32) {
    %c1_i32 = arith.constant 1 : i32
    %0 = arith.addi %arg1, %c1_i32 : i32
    %c1_i32_0 = arith.constant 1 : i32
    %1 = arith.muli %0, %c1_i32_0 : i32
    %c1_i32_1 = arith.constant 1 : i32
    %2 = arith.minsi %1, %c1_i32_1 : i32
    %c0_i32 = arith.constant 0 : i32
    %c0_i32_2 = arith.constant 0 : i32
    return %arg0, %2, %c0_i32 : i32, i32, i32
  }
  func.func @transform_2(%arg0: i32, %arg1: i32) -> (i32, i32) {
    %c0_i32 = arith.constant 0 : i32
    %c0_i32_0 = arith.constant 0 : i32
    %c0_i32_1 = arith.constant 0 : i32
    return %c0_i32, %c0_i32_0 : i32, i32
  }
  func.func @transform_3(%arg0: i32, %arg1: i32) -> (i32, i32) {
    %c0_i32 = arith.constant 0 : i32
    %c0_i32_0 = arith.constant 0 : i32
    %c0_i32_1 = arith.constant 0 : i32
    return %c0_i32, %c0_i32_0 : i32, i32
  }
  func.func @transform_4(%arg0: i32, %arg1: i32) -> (i32, i32) {
    %c0_i32 = arith.constant 0 : i32
    %c0_i32_0 = arith.constant 0 : i32
    %c0_i32_1 = arith.constant 0 : i32
    return %c0_i32, %c0_i32_0 : i32, i32
  }
  func.func @transform_5(%arg0: i32, %arg1: i32) -> (i32, i32) {
    %c0_i32 = arith.constant 0 : i32
    %c0_i32_0 = arith.constant 0 : i32
    return %arg0, %c0_i32 : i32, i32
  }
}

</mosaic_0001>

<llo_original>
// kernel: wordcnn_forward.1
$region0: #{wordcnn_forward.1}
  #allocation0 [shape = 'u32[]', space=smem, size = 0x4, offset = 0x4, fixed_abs, tag = 'smem constant byte address 0x4 - core index']
  #allocation1 [shape = 'u32[144,128]{1,0:T(1,128)}', space=vmem, size = 0x12000, scoped, tag = 'internal scratch']
  #allocation2 [shape = 'f32[2,48]{1,0:T(2,128)}', space=vmem, size = 0x400, scoped, tag = 'scratch operand']
  %s0 = inlined_call_operand.vmem [shape: bf16[2,16,32], index: 0, kind: input, shape index: {}, may-alias: {0,1}]
  %s1 = inlined_call_operand.vmem [shape: bf16[2,16,32], index: 1, kind: input, shape index: {}, may-alias: {0,1}]
  %s2 = inlined_call_operand.vmem [shape: bf16[160,48], index: 2, kind: input, shape index: {}]
  %s3 = inlined_call_operand.vmem [shape: bf16[48,128], index: 3, kind: input, shape index: {}]
  %s4 = inlined_call_operand.vmem [shape: f32[3,128], index: 4, kind: input, shape index: {}]
  %s5 = inlined_call_operand.hbm [shape: f32[2,128], index: 5, kind: output, shape index: {}]
  %s6 = sld [smem:[#allocation0]]
  $region143: #{wordcnn_forward.1} parent=0
    _
  %s8 = ssub.s32 1, %s6
  %s9 = scalar_select 0, %s8, %s6
  $region1: #{wordcnn_forward.1} parent=0
    #allocation3 [shape = 'u8[8192]{0}', space=vmem, size = 0x2000, scoped, tag = 'input window, operand 0']
    #allocation4 [shape = 'u8[8192]{0}', space=vmem, size = 0x2000, scoped, tag = 'input window, operand 1']
    #allocation5 [shape = 'u8[1024]{0}', space=vmem, size = 0x400, scoped, tag = 'output window, operand 0, single buffered']
    #allocation6 [shape = 's32[2]{0}', space=sflag, size = 0x8, scoped, tag = 'scoped memory for wordcnn_forward.1']
    %10 = vsyncpa [#allocation6], 0
    loop: start=0, step=1, limit=4
    $region2: #{wordcnn_forward.1} parent=1 // loop_pre_header
      _
    $region3: #{wordcnn_forward.1} parent=1 // loop_header
      %s12 = sphi 0, %s16
      %p13 = scmp.ge.s32.totalorder %s12, 4
      %s19 = sphi 0, %s31
      %s20 = sphi 0, %s27
      %s21 = sphi 0, %s19
      %s22 = sphi 0, %s20
      %s23 = sphi 0, %s21
      %s24 = sphi 0, %s22
      %s36 = sphi 0, %s38
      %s39 = sphi 0, %s36
      %s40 = sphi 0, %s39
      %s56 = sphi 0, %s40
      %s70 = sphi 0, %s72
      %s73 = sphi 0, %s70
      %s74 = sphi 0, %s73
      %s90 = sphi 0, %s74
      %s94 = sphi 0, %s94
      %s96 = sphi 0, %s94
      %s97 = sphi 0, %s96
      %s111 = sphi 0, %s97
      %s115 = sphi 0, %s115
      %s117 = sphi 0, %s115
      %s118 = sphi 0, %s117
      %s132 = sphi 0, %s118
      %s136 = sphi 0, %s136
      %s138 = sphi 0, %s136
      %s139 = sphi 0, %s138
      %s153 = sphi 0, %s139
      %s159 = sphi 0, %s161
      %s162 = sphi 0, %s159
      %s163 = sphi 0, %s162
      %s179 = sphi 0, %s163
    $region4: #{wordcnn_forward.1} parent=1 // loop_header_branch
      %15 = sbr.rel (%p13) target = $region8
    $region5: #{wordcnn_forward.1} parent=1 // loop_body
      %s17 = ssub.s32 %s12, 1
      %s18 = ssub.s32 %s12, 2
      %s25 = sadd.s32 1, %s20
      %p26 = scmp.ge.s32.totalorder %s25, 2
      %s27 = scalar_select %p26, 0, %s25
      %s28 = sadd.s32 1, %s19
      %s29 = scalar_select %p26, %s28, %s19
      %p30 = scmp.ge.s32.totalorder %s29, 1
      %s31 = scalar_select %p30, 0, %s29
      %s32 = ssub.s32 %s19, %s31
      %s33 = ssub.s32 %s20, %s27
      %s34 = sor.u32 %s32, %s33
      %p35 = scmp.eq.s32.totalorder %s34, 0
      %s37 = sadd.s32 %s36, 1
      %s38 = scalar_select %p35, %s36, %s37
      %p41 = pneg %p35
      %p42 = scmp.eq.s32.totalorder %s12, 1
      %p43 = por %p41, %p42
      %p44 = scmp.ne.s32.totalorder %s36, %s39
      %p45 = scmp.eq.s32.totalorder %s12, 0
      %p46 = por %p44, %p45
      %p47 = scmp.ne.s32.totalorder %s36, %s39
      %p48 = scmp.eq.s32.totalorder %s17, 1
      %p49 = por %p47, %p48
      %p50 = scmp.ne.s32.totalorder %s39, %s40
      %p51 = scmp.eq.s32.totalorder %s17, 0
      %p52 = por %p50, %p51
      %p53 = scmp.ne.s32.totalorder %s39, %s40
      %p54 = scmp.eq.s32.totalorder %s18, 1
      %p55 = por %p53, %p54
      %p57 = scmp.ne.s32.totalorder %s40, %s56
      %p58 = scmp.eq.s32.totalorder %s18, 0
      %p59 = por %p57, %p58
      %s60 = sadd.s32 %s20, 1
      %p61 = scmp.lt.s32.totalorder %s60, 1
      %s62 = scalar_select %p61, %s60, 1
      %s63 = sadd.s32 %s27, 1
      %p64 = scmp.lt.s32.totalorder %s63, 1
      %s65 = scalar_select %p64, %s63, 1
      %s66 = ssub.s32 %s19, %s31
      %s67 = ssub.s32 %s62, %s65
      %s68 = sor.u32 %s66, %s67
      %p69 = scmp.eq.s32.totalorder %s68, 0
      %s71 = sadd.s32 %s70, 1
      %s72 = scalar_select %p69, %s70, %s71
      %p75 = pneg %p69
      %p76 = scmp.eq.s32.totalorder %s12, 1
      %p77 = por %p75, %p76
      %p78 = scmp.ne.s32.totalorder %s70, %s73
      %p79 = scmp.eq.s32.totalorder %s12, 0
      %p80 = por %p78, %p79
      %p81 = scmp.ne.s32.totalorder %s70, %s73
      %p82 = scmp.eq.s32.totalorder %s17, 1
      %p83 = por %p81, %p82
      %p84 = scmp.ne.s32.totalorder %s73, %s74
      %p85 = scmp.eq.s32.totalorder %s17, 0
      %p86 = por %p84, %p85
      %p87 = scmp.ne.s32.totalorder %s73, %s74
      %p88 = scmp.eq.s32.totalorder %s18, 1
      %p89 = por %p87, %p88
      %p91 = scmp.ne.s32.totalorder %s74, %s90
      %p92 = scmp.eq.s32.totalorder %s18, 0
      %p93 = por %p91, %p92
      %s95 = sadd.s32 %s94, 1
      %p98 = scmp.eq.s32.totalorder %s12, 1
      %p99 = scmp.ne.s32.totalorder %s94, %s96
      %p100 = scmp.eq.s32.totalorder %s12, 0
      %p101 = por %p99, %p100
      %p102 = scmp.ne.s32.totalorder %s94, %s96
      %p103 = scmp.eq.s32.totalorder %s17, 1
      %p104 = por %p102, %p103
      %p105 = scmp.ne.s32.totalorder %s96, %s97
      %p106 = scmp.eq.s32.totalorder %s17, 0
      %p107 = por %p105, %p106
      %p108 = scmp.ne.s32.totalorder %s96, %s97
      %p109 = scmp.eq.s32.totalorder %s18, 1
      %p110 = por %p108, %p109
      %p112 = scmp.ne.s32.totalorder %s97, %s111
      %p113 = scmp.eq.s32.totalorder %s18, 0
      %p114 = por %p112, %p113
      %s116 = sadd.s32 %s115, 1
      %p119 = scmp.eq.s32.totalorder %s12, 1
      %p120 = scmp.ne.s32.totalorder %s115, %s117
      %p121 = scmp.eq.s32.totalorder %s12, 0
      %p122 = por %p120, %p121
      %p123 = scmp.ne.s32.totalorder %s115, %s117
      %p124 = scmp.eq.s32.totalorder %s17, 1
      %p125 = por %p123, %p124
      %p126 = scmp.ne.s32.totalorder %s117, %s118
      %p127 = scmp.eq.s32.totalorder %s17, 0
      %p128 = por %p126, %p127
      %p129 = scmp.ne.s32.totalorder %s117, %s118
      %p130 = scmp.eq.s32.totalorder %s18, 1
      %p131 = por %p129, %p130
      %p133 = scmp.ne.s32.totalorder %s118, %s132
      %p134 = scmp.eq.s32.totalorder %s18, 0
      %p135 = por %p133, %p134
      %s137 = sadd.s32 %s136, 1
      %p140 = scmp.eq.s32.totalorder %s12, 1
      %p141 = scmp.ne.s32.totalorder %s136, %s138
      %p142 = scmp.eq.s32.totalorder %s12, 0
      %p143 = por %p141, %p142
      %p144 = scmp.ne.s32.totalorder %s136, %s138
      %p145 = scmp.eq.s32.totalorder %s17, 1
      %p146 = por %p144, %p145
      %p147 = scmp.ne.s32.totalorder %s138, %s139
      %p148 = scmp.eq.s32.totalorder %s17, 0
      %p149 = por %p147, %p148
      %p150 = scmp.ne.s32.totalorder %s138, %s139
      %p151 = scmp.eq.s32.totalorder %s18, 1
      %p152 = por %p150, %p151
      %p154 = scmp.ne.s32.totalorder %s139, %s153
      %p155 = scmp.eq.s32.totalorder %s18, 0
      %p156 = por %p154, %p155
      %s157 = ssub.s32 %s19, %s31
      %p158 = scmp.eq.s32.totalorder %s157, 0
      %s160 = sadd.s32 %s159, 1
      %s161 = scalar_select %p158, %s159, %s160
      %p164 = pneg %p158
      %p165 = scmp.eq.s32.totalorder %s12, 1
      %p166 = por %p164, %p165
      %p167 = scmp.ne.s32.totalorder %s159, %s162
      %p168 = scmp.eq.s32.totalorder %s12, 0
      %p169 = por %p167, %p168
      %p170 = scmp.ne.s32.totalorder %s159, %s162
      %p171 = scmp.eq.s32.totalorder %s17, 1
      %p172 = por %p170, %p171
      %p173 = scmp.ne.s32.totalorder %s162, %s163
      %p174 = scmp.eq.s32.totalorder %s17, 0
      %p175 = por %p173, %p174
      %p176 = scmp.ne.s32.totalorder %s162, %s163
      %p177 = scmp.eq.s32.totalorder %s18, 1
      %p178 = por %p176, %p177
      %p180 = scmp.ne.s32.totalorder %s163, %s179
      %p181 = scmp.eq.s32.totalorder %s18, 0
      %p182 = por %p180, %p181
      %p183 = scmp.le.s32.totalorder 1, %s12
      %p184 = scmp.lt.s32.totalorder %s12, 3
      %p185 = pnand %p183, %p184
      %p186 = pneg %p185
      // Predicated region
      $region9: #{wordcnn_forward.1} parent=5 // pred_check
        _
      $region10: #{wordcnn_forward.1} parent=5 // pred_check_branch
        %188 = sbr.rel (%p185) target = $region12
      $region11: #{wordcnn_forward.1} parent=5 // pred_region
        %s189 = ssub.s32 %s12, 1
        // Predicated region
        $region13: #{wordcnn_forward.1} parent=11 // pred_check
          %p190 = pneg %p107
        $region14: #{wordcnn_forward.1} parent=11 // pred_check_branch
          %192 = sbr.rel (%p190) target = $region16
        $region15: #{wordcnn_forward.1} parent=11 // pred_region
          _
        $region16: #{wordcnn_forward.1} parent=11 // pred_fallthru
          _
        // Predicated region
        $region17: #{wordcnn_forward.1} parent=11 // pred_check
          %p193 = pneg %p128
        $region18: #{wordcnn_forward.1} parent=11 // pred_check_branch
          %195 = sbr.rel (%p193) target = $region20
        $region19: #{wordcnn_forward.1} parent=11 // pred_region
          _
        $region20: #{wordcnn_forward.1} parent=11 // pred_fallthru
          _
        // Predicated region
        $region21: #{wordcnn_forward.1} parent=11 // pred_check
          %p196 = pneg %p149
        $region22: #{wordcnn_forward.1} parent=11 // pred_check_branch
          %198 = sbr.rel (%p196) target = $region24
        $region23: #{wordcnn_forward.1} parent=11 // pred_region
          _
        $region24: #{wordcnn_forward.1} parent=11 // pred_fallthru
          _
      $region12: #{wordcnn_forward.1} parent=5 // pred_fallthru
        _
      %p199 = scmp.lt.s32.totalorder %s12, 2
      // Predicated region
      $region25: #{wordcnn_forward.1} parent=5 // pred_check
        %p200 = pneg %p199
      $region26: #{wordcnn_forward.1} parent=5 // pred_check_branch
        %202 = sbr.rel (%p200) target = $region28
      $region27: #{wordcnn_forward.1} parent=5 // pred_region
        // Predicated region
        $region29: #{wordcnn_forward.1} parent=27 // pred_check
          %p203 = pneg %p46
        $region30: #{wordcnn_forward.1} parent=27 // pred_check_branch
          %205 = sbr.rel (%p203) target = $region32
        $region31: #{wordcnn_forward.1} parent=27 // pred_region
          %s206 = sand.u32 %s36, 1
          %s207 = sand.u32 %s36, 1
          %s208 = smul.addr %s207, 8
          %s209 = scalar_lea.vmem [#allocation3], %s208
          %s210 = smul.u32 2, %s19
          %s211 = smul.addr %s210, 2
          %s212 = sadd.s32 %s20, %s211
          %s213 = smul.addr %s212, 4
          %s214 = scalar_lea.vmem %s0, %s213
          // Predicated region
          $region33: #{wordcnn_forward.1} parent=31 // pred_check
            _
          $region34: #{wordcnn_forward.1} parent=31 // pred_check_branch
            %216 = sbr.rel (0) target = $region36
          $region35: #{wordcnn_forward.1} parent=31 // pred_region
            // Predicated region
            $region37: #{wordcnn_forward.1} parent=35 // pred_check
              _
            $region38: #{wordcnn_forward.1} parent=35 // pred_check_branch
              %218 = sbr.rel target = $region40
            $region39: #{wordcnn_forward.1} parent=35 // pred_region
              // Predicated region
              $region52: #{wordcnn_forward.1} parent=39 // pred_check
                _
              $region53: #{wordcnn_forward.1} parent=39 // pred_check_branch
                %235 = sbr.rel (0) target = $region55
              $region54: #{wordcnn_forward.1} parent=39 // pred_region
                loop: start=0, step=1, limit=1
                $region56: #{wordcnn_forward.1} parent=54 // loop_pre_header
                  _
                $region57: #{wordcnn_forward.1} parent=54 // loop_header
                  %s237 = sphi 0, %s241
                  %p238 = scmp.ge.s32.totalorder %s237, 1
                  %s242 = sphi %s214, %s214
                  %s243 = sphi %s209, %s209
                $region58: #{wordcnn_forward.1} parent=54 // loop_header_branch
                  %240 = sbr.rel (%p238) target = $region62
                $region59: #{wordcnn_forward.1} parent=54 // loop_body
                  _
                $region60: #{wordcnn_forward.1} parent=54 // loop_footer
                  %s241 = sadd.s32 1, %s237
                $region61: #{wordcnn_forward.1} parent=54 // loop_footer_branch
                  %236 = sbr.rel target = $region57
                $region62: #{wordcnn_forward.1} parent=54 // loop_exit
                  _
                loop: start=0, step=1, limit=1
                $region63: #{wordcnn_forward.1} parent=54 // loop_pre_header
                  _
                $region64: #{wordcnn_forward.1} parent=54 // loop_header
                  %s246 = sphi 0, %s250
                  %p247 = scmp.ge.s32.totalorder %s246, 1
                  %s251 = sphi %s214, %s214
                  %s252 = sphi %s209, %s209
                $region65: #{wordcnn_forward.1} parent=54 // loop_header_branch
                  %249 = sbr.rel (%p247) target = $region69
                $region66: #{wordcnn_forward.1} parent=54 // loop_body
                  %v253 = vld [vmem:[%s251] sm:$0xf]
                  %254 = vst [vmem:[%s252] sm:$0xf] %v253
                  %v255 = vld [vmem:[%s251 + $0x8] sm:$0xf]
                  %256 = vst [vmem:[%s252 + $0x4] sm:$0xf] %v255
                $region67: #{wordcnn_forward.1} parent=54 // loop_footer
                  %s250 = sadd.s32 1, %s246
                $region68: #{wordcnn_forward.1} parent=54 // loop_footer_branch
                  %245 = sbr.rel target = $region64
                $region69: #{wordcnn_forward.1} parent=54 // loop_exit
                  _
              $region55: #{wordcnn_forward.1} parent=39 // pred_fallthru
                _
            $region40: #{wordcnn_forward.1} parent=35 // pred_fallthru
              _
            // Predicated region
            $region41: #{wordcnn_forward.1} parent=35 // pred_check
              _
            $region42: #{wordcnn_forward.1} parent=35 // pred_check_branch
              %220 = sbr.rel (0) target = $region44
            $region43: #{wordcnn_forward.1} parent=35 // pred_region
              loop: start=0, step=1, limit=1
              $region45: #{wordcnn_forward.1} parent=43 // loop_pre_header
                _
              $region46: #{wordcnn_forward.1} parent=43 // loop_header
                %s223 = sphi 0, %s227
                %p224 = scmp.ge.s32.totalorder %s223, 1
                %s228 = sphi %s214, %s214
                %s229 = sphi %s209, %s209
              $region47: #{wordcnn_forward.1} parent=43 // loop_header_branch
                %226 = sbr.rel (%p224) target = $region51
              $region48: #{wordcnn_forward.1} parent=43 // loop_body
                %v230 = vld [vmem:[%s228] sm:$0xf]
                %231 = vst [vmem:[%s229] sm:$0xf] %v230
                %v232 = vld [vmem:[%s228 + $0x8] sm:$0xf]
                %233 = vst [vmem:[%s229 + $0x4] sm:$0xf] %v232
              $region49: #{wordcnn_forward.1} parent=43 // loop_footer
                %s227 = sadd.s32 1, %s223
              $region50: #{wordcnn_forward.1} parent=43 // loop_footer_branch
                %222 = sbr.rel target = $region46
              $region51: #{wordcnn_forward.1} parent=43 // loop_exit
                _
            $region44: #{wordcnn_forward.1} parent=35 // pred_fallthru
              _
          $region36: #{wordcnn_forward.1} parent=31 // pred_fallthru
            _
          %257 = vnop
        $region32: #{wordcnn_forward.1} parent=27 // pred_fallthru
          _
        // Predicated region
        $region70: #{wordcnn_forward.1} parent=27 // pred_check
          %p258 = pneg %p80
        $region71: #{wordcnn_forward.1} parent=27 // pred_check_branch
          %260 = sbr.rel (%p258) target = $region73
        $region72: #{wordcnn_forward.1} parent=27 // pred_region
          %s261 = sand.u32 %s70, 1
          %s262 = sand.u32 %s70, 1
          %s263 = smul.addr %s262, 8
          %s264 = scalar_lea.vmem [#allocation4], %s263
          %s265 = sadd.s32 %s20, 1
          %p266 = scmp.lt.s32.totalorder %s265, 1
          %s267 = scalar_select %p266, %s265, 1
          %s268 = smul.u32 2, %s19
          %s269 = smul.addr %s268, 2
          %s270 = sadd.s32 %s267, %s269
          %s271 = smul.addr %s270, 4
          %s272 = scalar_lea.vmem %s1, %s271
          // Predicated region
          $region74: #{wordcnn_forward.1} parent=72 // pred_check
            _
          $region75: #{wordcnn_forward.1} parent=72 // pred_check_branch
            %274 = sbr.rel (0) target = $region77
          $region76: #{wordcnn_forward.1} parent=72 // pred_region
            // Predicated region
            $region78: #{wordcnn_forward.1} parent=76 // pred_check
              _
            $region79: #{wordcnn_forward.1} parent=76 // pred_check_branch
              %276 = sbr.rel target = $region81
            $region80: #{wordcnn_forward.1} parent=76 // pred_region
              // Predicated region
              $region93: #{wordcnn_forward.1} parent=80 // pred_check
                _
              $region94: #{wordcnn_forward.1} parent=80 // pred_check_branch
                %293 = sbr.rel (0) target = $region96
              $region95: #{wordcnn_forward.1} parent=80 // pred_region
                loop: start=0, step=1, limit=1
                $region97: #{wordcnn_forward.1} parent=95 // loop_pre_header
                  _
                $region98: #{wordcnn_forward.1} parent=95 // loop_header
                  %s295 = sphi 0, %s299
                  %p296 = scmp.ge.s32.totalorder %s295, 1
                  %s300 = sphi %s272, %s272
                  %s301 = sphi %s264, %s264
                $region99: #{wordcnn_forward.1} parent=95 // loop_header_branch
                  %298 = sbr.rel (%p296) target = $region103
                $region100: #{wordcnn_forward.1} parent=95 // loop_body
                  _
                $region101: #{wordcnn_forward.1} parent=95 // loop_footer
                  %s299 = sadd.s32 1, %s295
                $region102: #{wordcnn_forward.1} parent=95 // loop_footer_branch
                  %294 = sbr.rel target = $region98
                $region103: #{wordcnn_forward.1} parent=95 // loop_exit
                  _
                loop: start=0, step=1, limit=1
                $region104: #{wordcnn_forward.1} parent=95 // loop_pre_header
                  _
                $region105: #{wordcnn_forward.1} parent=95 // loop_header
                  %s304 = sphi 0, %s308
                  %p305 = scmp.ge.s32.totalorder %s304, 1
                  %s309 = sphi %s272, %s272
                  %s310 = sphi %s264, %s264
                $region106: #{wordcnn_forward.1} parent=95 // loop_header_branch
                  %307 = sbr.rel (%p305) target = $region110
                $region107: #{wordcnn_forward.1} parent=95 // loop_body
                  %v311 = vld [vmem:[%s309] sm:$0xf]
                  %312 = vst [vmem:[%s310] sm:$0xf] %v311
                  %v313 = vld [vmem:[%s309 + $0x8] sm:$0xf]
                  %314 = vst [vmem:[%s310 + $0x4] sm:$0xf] %v313
                $region108: #{wordcnn_forward.1} parent=95 // loop_footer
                  %s308 = sadd.s32 1, %s304
                $region109: #{wordcnn_forward.1} parent=95 // loop_footer_branch
                  %303 = sbr.rel target = $region105
                $region110: #{wordcnn_forward.1} parent=95 // loop_exit
                  _
              $region96: #{wordcnn_forward.1} parent=80 // pred_fallthru
                _
            $region81: #{wordcnn_forward.1} parent=76 // pred_fallthru
              _
            // Predicated region
            $region82: #{wordcnn_forward.1} parent=76 // pred_check
              _
            $region83: #{wordcnn_forward.1} parent=76 // pred_check_branch
              %278 = sbr.rel (0) target = $region85
            $region84: #{wordcnn_forward.1} parent=76 // pred_region
              loop: start=0, step=1, limit=1
              $region86: #{wordcnn_forward.1} parent=84 // loop_pre_header
                _
              $region87: #{wordcnn_forward.1} parent=84 // loop_header
                %s281 = sphi 0, %s285
                %p282 = scmp.ge.s32.totalorder %s281, 1
                %s286 = sphi %s272, %s272
                %s287 = sphi %s264, %s264
              $region88: #{wordcnn_forward.1} parent=84 // loop_header_branch
                %284 = sbr.rel (%p282) target = $region92
              $region89: #{wordcnn_forward.1} parent=84 // loop_body
                %v288 = vld [vmem:[%s286] sm:$0xf]
                %289 = vst [vmem:[%s287] sm:$0xf] %v288
                %v290 = vld [vmem:[%s286 + $0x8] sm:$0xf]
                %291 = vst [vmem:[%s287 + $0x4] sm:$0xf] %v290
              $region90: #{wordcnn_forward.1} parent=84 // loop_footer
                %s285 = sadd.s32 1, %s281
              $region91: #{wordcnn_forward.1} parent=84 // loop_footer_branch
                %280 = sbr.rel target = $region87
              $region92: #{wordcnn_forward.1} parent=84 // loop_exit
                _
            $region85: #{wordcnn_forward.1} parent=76 // pred_fallthru
              _
          $region77: #{wordcnn_forward.1} parent=72 // pred_fallthru
            _
          %315 = vnop
        $region73: #{wordcnn_forward.1} parent=27 // pred_fallthru
          _
      $region28: #{wordcnn_forward.1} parent=5 // pred_fallthru
        _
      %p316 = scmp.le.s32.totalorder 1, %s12
      %p317 = scmp.lt.s32.totalorder %s12, 3
      %p318 = pnand %p316, %p317
      %p319 = pneg %p318
      // Predicated region
      $region111: #{wordcnn_forward.1} parent=5 // pred_check
        _
      $region112: #{wordcnn_forward.1} parent=5 // pred_check_branch
        %321 = sbr.rel (%p318) target = $region114
      $region113: #{wordcnn_forward.1} parent=5 // pred_region
        %s322 = ssub.s32 %s12, 1
        %s323 = sand.u32 %s39, 1
        %s324 = sand.u32 %s39, 1
        %s325 = smul.addr %s324, 8
        %s326 = scalar_lea.vmem [#allocation3], %s325
        // Predicated region
        $region115: #{wordcnn_forward.1} parent=113 // pred_check
          %p327 = pneg %p52
        $region116: #{wordcnn_forward.1} parent=113 // pred_check_branch
          %329 = sbr.rel (%p327) target = $region118
        $region117: #{wordcnn_forward.1} parent=113 // pred_region
          _
        $region118: #{wordcnn_forward.1} parent=113 // pred_fallthru
          _
        %s330 = sand.u32 %s73, 1
        %s331 = sand.u32 %s73, 1
        %s332 = smul.addr %s331, 8
        %s333 = scalar_lea.vmem [#allocation4], %s332
        // Predicated region
        $region119: #{wordcnn_forward.1} parent=113 // pred_check
          %p334 = pneg %p86
        $region120: #{wordcnn_forward.1} parent=113 // pred_check_branch
          %336 = sbr.rel (%p334) target = $region122
        $region121: #{wordcnn_forward.1} parent=113 // pred_region
          _
        $region122: #{wordcnn_forward.1} parent=113 // pred_fallthru
          _
        %s337 = sand.u32 %s39, 1
        %s338 = sand.u32 %s39, 1
        %s339 = smul.addr %s338, 8
        %s340 = scalar_lea.vmem [#allocation3], %s339
        %p341 = pneg %p52
        %p342 = pneg %p49
        %s343 = sand.u32 %s73, 1
        %s344 = sand.u32 %s73, 1
        %s345 = smul.addr %s344, 8
        %s346 = scalar_lea.vmem [#allocation4], %s345
        %p347 = pneg %p86
        %p348 = pneg %p83
        %p349 = pneg %p107
        %p350 = pneg %p104
        %p351 = pneg %p128
        %p352 = pneg %p125
        %p353 = pneg %p149
        %p354 = pneg %p146
        %p355 = pneg %p175
        %p356 = pneg %p172
        %s357 = smul.u32 2, %s21
        %s358 = sadd.s32 %s22, 1
        %p359 = scmp.lt.s32.totalorder %s358, 1
        %s360 = scalar_select %p359, %s358, 1
        %s361 = smul.u32 2, %s21
        %p363 = scmp.eq.s32.totalorder %s22, 0
        // Predicated region
        $region123: #{wordcnn_forward.1} parent=113 // pred_check
          %p364 = pneg %p363
        $region124: #{wordcnn_forward.1} parent=113 // pred_check_branch
          %366 = sbr.rel (%p364) target = $region126
        $region125: #{wordcnn_forward.1} parent=113 // pred_region
          %vm367 = vcmask 386048
          %368 = vst.msk [vmem:[#allocation2] sm:$0x3] %vm367, -inf
        $region126: #{wordcnn_forward.1} parent=113 // pred_fallthru
          _
        %v369 = vld [vmem:[%s326] sm:$0xf]
        %v370 = vld [vmem:[%s326 + $0x4] sm:$0xf]
        %v371 = vld [vmem:[%s333] sm:$0xf]
        %v372 = vld [vmem:[%s333 + $0x4] sm:$0xf]
        %v375 = vunpack.c.l.b16 %v371
        %v376 = vunpack.c.l.b16 %v372
        %v377 = vpack.c.b16 %v375, %v375
        %v378 = vpack.c.b16 %v376, %v376
        %vm379 = vcmask 1043456
        %v382 = vsel %vm379, %v369, %v377
        %v385 = vsel %vm379, %v370, %v378
        %v386 = vshrl.u32 %v382, 16
        %v388 = vshll.u32 %v382, 16
        %v390 = vrot.slane %v388, 1
        %v391 = vor.u32 %v386, %v390
        %v392 = vshrl.u32 %v385, 16
        %v394 = vshll.u32 %v385, 16
        %v396 = vrot.slane %v394, 1
        %v397 = vor.u32 %v392, %v396
        %398 = vrot.lane.b32.xlu0 %v391, 32
        %v399 = vpop.permute.xlu0 %398
        %400 = vrot.lane.b32.xlu0 %v397, 32
        %v401 = vpop.permute.xlu0 %400
        %v404 = vrot.slane %v382, 1
        %v405 = vrot.slane %v385, 1
        %406 = vrot.lane.b32.xlu0 %v404, 64
        %v407 = vpop.permute.xlu0 %406
        %408 = vrot.lane.b32.xlu0 %v405, 64
        %v409 = vpop.permute.xlu0 %408
        %v410 = vrot.slane %v386, 1
        %v411 = vrot.slane %v388, 2
        %v412 = vor.u32 %v410, %v411
        %v413 = vrot.slane %v392, 1
        %v414 = vrot.slane %v394, 2
        %v415 = vor.u32 %v413, %v414
        %416 = vrot.lane.b32.xlu0 %v412, 96
        %v417 = vpop.permute.xlu0 %416
        %418 = vrot.lane.b32.xlu0 %v415, 96
        %v419 = vpop.permute.xlu0 %418
        %v420 = vrot.slane %v382, 2
        %v421 = vrot.slane %v385, 2
        %vm422 = vcmask 261120
        %v424 = vsel %vm422, %v382, %v399
        %v426 = vsel %vm422, %v385, %v401
        %vm427 = vcmask 523264
        %v429 = vsel %vm427, %v424, %v407
        %v431 = vsel %vm427, %v426, %v409
        %vm432 = vcmask 785408
        %v434 = vsel %vm432, %v429, %v417
        %v436 = vsel %vm432, %v431, %v419
        %v439 = vunpack.c.l.b16 %v434
        %v440 = vunpack.c.l.b16 %v420
        %v441 = vunpack.c.l.b16 %v436
        %v442 = vunpack.c.l.b16 %v421
        %v443 = vld [vmem:[%s2] sm:$0xf]
        %v444 = vld [vmem:[%s2 + $0x4] sm:$0xf]
        %v445 = vld [vmem:[%s2 + $0x8] sm:$0xf]
        %v446 = vld [vmem:[%s2 + $0xc] sm:$0xf]
        %v447 = vld [vmem:[%s2 + $0x10] sm:$0xf]
        %v448 = vld [vmem:[%s2 + $0x14] sm:$0xf]
        %v449 = vld [vmem:[%s2 + $0x18] sm:$0xf]
        %v450 = vld [vmem:[%s2 + $0x1c] sm:$0xf]
        %v451 = vld [vmem:[%s2 + $0x20] sm:$0xf]
        %v452 = vld [vmem:[%s2 + $0x24] sm:$0xf]
        %v453 = vld [vmem:[%s2 + $0x28] sm:$0xf]
        %v454 = vld [vmem:[%s2 + $0x2c] sm:$0xf]
        %v455 = vld [vmem:[%s2 + $0x30] sm:$0xf]
        %v456 = vld [vmem:[%s2 + $0x34] sm:$0xf]
        %v457 = vld [vmem:[%s2 + $0x38] sm:$0xf]
        %v458 = vld [vmem:[%s2 + $0x3c] sm:$0xf]
        %v459 = vld [vmem:[%s2 + $0x40] sm:$0xf]
        %v460 = vld [vmem:[%s2 + $0x44] sm:$0xf]
        %v461 = vld [vmem:[%s2 + $0x48] sm:$0xf]
        %v462 = vld [vmem:[%s2 + $0x4c] sm:$0xf]
        %v463 = vpack.c.b16 %v441, %v439
        %v464 = vpack.c.b16 %v442, %v440
        %v486 = vunpack.c.l.b16 %v443
        %v487 = vunpack.c.l.b16 %v444
        %v488 = vunpack.c.l.b16 %v445
        %v489 = vunpack.c.l.b16 %v446
        %v490 = vunpack.c.l.b16 %v447
        %v491 = vunpack.c.l.b16 %v448
        %v492 = vunpack.c.l.b16 %v449
        %v493 = vunpack.c.l.b16 %v450
        %v494 = vunpack.c.l.b16 %v451
        %v495 = vunpack.c.l.b16 %v452
        %v496 = vunpack.c.l.b16 %v453
        %v497 = vunpack.c.l.b16 %v454
        %v498 = vunpack.c.l.b16 %v455
        %v499 = vunpack.c.l.b16 %v456
        %v500 = vunpack.c.l.b16 %v457
        %v501 = vunpack.c.l.b16 %v458
        %v502 = vunpack.c.l.b16 %v459
        %v503 = vunpack.c.l.b16 %v460
        %v504 = vunpack.c.l.b16 %v461
        %v505 = vunpack.c.l.b16 %v462
        %v506 = vpack.c.b16 %v487, %v486
        %v507 = vpack.c.b16 %v489, %v488
        %v508 = vpack.c.b16 %v491, %v490
        %v509 = vpack.c.b16 %v493, %v492
        %v510 = vpack.c.b16 %v495, %v494
        %v511 = vpack.c.b16 %v497, %v496
        %v512 = vpack.c.b16 %v499, %v498
        %v513 = vpack.c.b16 %v501, %v500
        %v514 = vpack.c.b16 %v503, %v502
        %v515 = vpack.c.b16 %v505, %v504
        %v527 = vsel %vm422, %v464, 0
        %529 = vmatprep.subr.bf16.mxu0 0
        %530 = vmatpush1.bf16.msra.mxu0 %v506
        %531 = vmatprep.subr.bf16.mxu0 0
        %532 = vmatpush1.bf16.msra.mxu0 %v507
        %533 = vmatprep.subr.bf16.mxu0 0
        %534 = vmatpush1.bf16.msra.mxu0 %v508
        %535 = vmatprep.subr.bf16.mxu0 0
        %536 = vmatpush1.bf16.msra.mxu0 %v509
        %537 = vmatprep.subr.bf16.mxu0 0
        %538 = vmatpush1.bf16.msra.mxu0 %v510
        %539 = vmatprep.subr.bf16.mxu0 0
        %540 = vmatpush1.bf16.msra.mxu0 %v511
        %541 = vmatprep.subr.bf16.mxu0 0
        %542 = vmatpush1.bf16.msra.mxu0 %v512
        %543 = vmatprep.subr.bf16.mxu0 0
        %544 = vmatpush1.bf16.msra.mxu0 %v513
        %545 = vmatprep.subr.bf16.mxu0 0
        %546 = vmatpush1.bf16.msra.mxu0 %v514
        %547 = vmatprep.subr.bf16.mxu0 0
        %548 = vmatpush1.bf16.msra.mxu0 %v515
        %549 = vmatprep.subr.bf16.mxu0 0
        %550 = vmatpush1.bf16.msra.mxu0 0
        %551 = vmatprep.subr.bf16.mxu0 0
        %552 = vmatpush1.bf16.msra.mxu0 0
        %553 = vmatprep.subr.bf16.mxu0 0
        %554 = vmatpush1.bf16.msra.mxu0 0
        %555 = vmatprep.subr.bf16.mxu0 0
        %556 = vmatpush1.bf16.msra.mxu0 0
        %557 = vmatprep.subr.bf16.mxu0 0
        %558 = vmatpush1.bf16.msra.mxu0 0
        %559 = vmatprep.subr.bf16.mxu0 0
        %560 = vmatpush1.bf16.msra.mxu0 0
        %561 = vmatprep.mubr.bf16.mxu0 %v527
        %562 = vmatmul.mubr.bf16.gmra.mrb[0].mxu0 %v463
        %v563 = vpop.f32.mrb[0].mxu0
        %v564 = vadd.f32 0.0, %v563
        %v565 = vpop.f32.mrb[0].mxu0
        %v566 = vpop.f32.mrb[0].mxu0
        %v567 = vadd.f32 0.0, %v566
        %v568 = vpop.f32.mrb[0].mxu0
        %569 = vdwg.mxu0
        %s570 = smul.u32 %s22, 8
        %v571 = vlaneseq
        %v572 = vshrl.u32 %v571, 7
        %v573 = vstv %s570
        %v574 = vadd.s32 %v573, %v572
        %v575 = vcvt.s32.f32 %v574
        %v576 = vld [vmem:[%s4 + $0x2] sm:$0x1]
        %v577 = vlaneseq
        %v578 = vshrl.u32 %v577, 7
        %v579 = vsub.s32 0, %v578
        %v580 = vrot.slane %v576, %v579
        %vm581 = vcmp.le.f32.partialorder %v575, %v580
        %v582 = vsel %vm581, 1, 0
        %vm583 = vcmp.eq.s32.totalorder %v582, 1
        %v584 = vsel %vm583, %v564, -inf
        %v585 = vsel %vm583, %v567, -inf
        %v586 = vld [vmem:[#allocation2] sm:$0x3]
        %vm587 = vcmask 392192
        %v588 = vsel %vm587, %v584, -inf
        %v589 = vrot.slane %v588, 4
        %v590 = vmax.f32 %v588, %v589
        %v591 = vrot.slane %v590, 2
        %v592 = vmax.f32 %v590, %v591
        %v593 = vrot.slane %v592, 1
        %v594 = vmax.f32 %v592, %v593
        %v595 = vsel %vm587, %v585, -inf
        %v596 = vrot.slane %v595, 4
        %v597 = vmax.f32 %v595, %v596
        %v598 = vrot.slane %v597, 2
        %v599 = vmax.f32 %v597, %v598
        %v600 = vrot.slane %v599, 1
        %v601 = vmax.f32 %v599, %v600
        %vm604 = vcmask 1041409
        %v605 = vsel %vm604, %v601, %v594
        %v607 = vmax.f32 %v586, %v605
        %vm608 = vcmask 386048
        %609 = vst.msk [vmem:[#allocation2] sm:$0x3] %vm608, %v607
        %p610 = scmp.eq.s32.totalorder %s22, 1
        // Predicated region
        $region127: #{wordcnn_forward.1} parent=113 // pred_check
          %p611 = pneg %p610
        $region128: #{wordcnn_forward.1} parent=113 // pred_check_branch
          %613 = sbr.rel (%p611) target = $region130
        $region129: #{wordcnn_forward.1} parent=113 // pred_region
          %v614 = vld [vmem:[#allocation2] sm:$0x3]
          %v615 = vld [vmem:[%s4] sm:$0x1]
          %v616 = vlaneseq
          %v617 = vshrl.u32 %v616, 7
          %v618 = vsub.s32 0, %v617
          %v619 = vrot.slane %v615, %v618
          %v620 = vadd.f32 %v614, %v619
          %v621 = vmax.f32 %v620, 0.0
          %v622 = vpack.c.bf16 %v621, %v621
          %v623 = vld [vmem:[%s3] sm:$0xf]
          %v624 = vld [vmem:[%s3 + $0x4] sm:$0xf]
          %v625 = vld [vmem:[%s3 + $0x8] sm:$0xf]
          %v626 = vld [vmem:[%s3 + $0xc] sm:$0xf]
          %v627 = vld [vmem:[%s3 + $0x10] sm:$0xf]
          %v628 = vld [vmem:[%s3 + $0x14] sm:$0xf]
          %v629 = vld [vmem:[%s4 + $0x1] sm:$0x1]
          %v630 = vlaneseq
          %v631 = vshrl.u32 %v630, 7
          %v632 = vsub.s32 0, %v631
          %v633 = vrot.slane %v629, %v632
          %v640 = vunpack.c.l.b16 %v623
          %v641 = vunpack.c.l.b16 %v624
          %v642 = vunpack.c.l.b16 %v625
          %v643 = vunpack.c.l.b16 %v626
          %v644 = vunpack.c.l.b16 %v627
          %v645 = vunpack.c.l.b16 %v628
          %v646 = vpack.c.b16 %v641, %v640
          %v647 = vpack.c.b16 %v643, %v642
          %v648 = vpack.c.b16 %v645, %v644
          %v653 = vsel %vm587, %v622, 0
          %655 = vmatprep.subr.bf16.mxu0 0
          %656 = vmatpush1.bf16.msra.mxu0 %v646
          %657 = vmatprep.subr.bf16.mxu0 0
          %658 = vmatpush1.bf16.msra.mxu0 %v647
          %659 = vmatprep.subr.bf16.mxu0 0
          %660 = vmatpush1.bf16.msra.mxu0 %v648
          %661 = vmatprep.subr.bf16.mxu0 0
          %662 = vmatpush1.bf16.msra.mxu0 0
          %663 = vmatprep.subr.bf16.mxu0 0
          %664 = vmatpush1.bf16.msra.mxu0 0
          %665 = vmatprep.subr.bf16.mxu0 0
          %666 = vmatpush1.bf16.msra.mxu0 0
          %667 = vmatprep.subr.bf16.mxu0 0
          %668 = vmatpush1.bf16.msra.mxu0 0
          %669 = vmatprep.subr.bf16.mxu0 0
          %670 = vmatpush1.bf16.msra.mxu0 0
          %671 = vmatprep.subr.bf16.mxu0 0
          %672 = vmatpush1.bf16.msra.mxu0 0
          %673 = vmatprep.subr.bf16.mxu0 0
          %674 = vmatpush1.bf16.msra.mxu0 0
          %675 = vmatprep.subr.bf16.mxu0 0
          %676 = vmatpush1.bf16.msra.mxu0 0
          %677 = vmatprep.subr.bf16.mxu0 0
          %678 = vmatpush1.bf16.msra.mxu0 0
          %679 = vmatprep.subr.bf16.mxu0 0
          %680 = vmatpush1.bf16.msra.mxu0 0
          %681 = vmatprep.subr.bf16.mxu0 0
          %682 = vmatpush1.bf16.msra.mxu0 0
          %683 = vmatprep.subr.bf16.mxu0 0
          %684 = vmatpush1.bf16.msra.mxu0 0
          %685 = vmatprep.subr.bf16.mxu0 0
          %686 = vmatpush1.bf16.msra.mxu0 0
          %687 = vmatprep.mubr.bf16.mxu0 0
          %688 = vmatmul.mubr.bf16.gmra.mrb[0].mxu0 %v653
          %v689 = vpop.f32.mrb[0].mxu0
          %v690 = vadd.f32 %v633, %v689
          %v691 = vpop.f32.mrb[0].mxu0
          %v692 = vpop.f32.mrb[0].mxu0
          %v693 = vpop.f32.mrb[0].mxu0
          %694 = vdwg.mxu0
          %695 = vst [vmem:[#allocation5] sm:$0x3] %v690
        $region130: #{wordcnn_forward.1} parent=113 // pred_fallthru
          _
        // Predicated region
        $region131: #{wordcnn_forward.1} parent=113 // pred_check
          %p696 = pneg %p172
        $region132: #{wordcnn_forward.1} parent=113 // pred_check_branch
          %698 = sbr.rel (%p696) target = $region134
        $region133: #{wordcnn_forward.1} parent=113 // pred_region
          %s700 = ssub.s32 32, 32
          %701 = vsyncadd [#allocation6], %s700
          %s702 = smul.addr %s21, 32
          %s703 = scalar_lea.hbm %s5, %s702
          %s705 = sshll.u32 [#allocation5], 4
          %s706 = int_to_ptr.vmem [resolvable:$true] %s705
          %708 = dma.vmem_to_hbm [thread:$0]  %s706, 32, %s703, [#allocation6]
        $region134: #{wordcnn_forward.1} parent=113 // pred_fallthru
          _
        // Predicated region
        $region135: #{wordcnn_forward.1} parent=113 // pred_check
          %p709 = pneg %p172
        $region136: #{wordcnn_forward.1} parent=113 // pred_check_branch
          %711 = sbr.rel (%p709) target = $region138
        $region137: #{wordcnn_forward.1} parent=113 // pred_region
          %712 = dma.done [#allocation6], 32
        $region138: #{wordcnn_forward.1} parent=113 // pred_fallthru
          _
      $region114: #{wordcnn_forward.1} parent=5 // pred_fallthru
        _
      %p713 = scmp.le.s32.totalorder 2, %s12
      // Predicated region
      $region139: #{wordcnn_forward.1} parent=5 // pred_check
        %p714 = pneg %p713
      $region140: #{wordcnn_forward.1} parent=5 // pred_check_branch
        %716 = sbr.rel (%p714) target = $region142
      $region141: #{wordcnn_forward.1} parent=5 // pred_region
        %s717 = ssub.s32 %s12, 2
      $region142: #{wordcnn_forward.1} parent=5 // pred_fallthru
        _
    $region6: #{wordcnn_forward.1} parent=1 // loop_footer
      %s16 = sadd.s32 1, %s12
    $region7: #{wordcnn_forward.1} parent=1 // loop_footer_branch
      %11 = sbr.rel target = $region3
    $region8: #{wordcnn_forward.1} parent=1 // loop_exit
      _
    %718 = vsyncpa [#allocation6], 1
    %s719 = scalar_lea.sflag [#allocation6], 1
    %720 = vsyncpa %s719, 1

</llo_original>
